<compile_context>
chip_gen: v7x
topology: tpu7x:2x2x1
jax: 0.10.0
libtpu: 0.0.40
codegen_flags: <defaults>
</compile_context>

<pallas_src>
import math

import jax
import jax.numpy as jnp
from jax.experimental import pallas as pl
from jax.experimental.pallas import tpu as pltpu

LN_EPS = 1e-6                 # T5Config.layer_norm_epsilon default
_GELU_C = 0.7978845608028654  # sqrt(2/pi), gelu_new tanh approximation


def _round_up(x, m):
    return (x + m - 1) // m * m


def _chip_defaults():
    """(tile_m, tile_f, vmem_limit_bytes, min_row_tiles) tuned per TPU generation."""
    try:
        kind = jax.devices()[0].device_kind.lower()
    except Exception:
        kind = ""
    if "v6" in kind:                          # v6e: 128 MiB VMEM; needs ~650 flop/byte for MXU-bound
        return 768, 512, 104 << 20, 1
    if "v7" in kind or "7x" in kind:          # v7x: 64 MiB VMEM, 2 TCs/chip, 3.2 TB/s HBM
        return 512, 256, 56 << 20, 2
    if "v5 lite" in kind or "v5e" in kind or "v5lite" in kind:   # v5e: compute-bound at 256 rows
        return 256, 256, 100 << 20, 1
    if "v5" in kind:                          # v5p (megacore)
        return 512, 512, 96 << 20, 2
    return 256, 256, 48 << 20, 2              # unknown: conservative


def _pick_tile_f(d_ff_p, target):
    """Largest multiple of 128 that divides d_ff_p (itself a 128 multiple) and is <= target."""
    target = max(128, min(int(target), d_ff_p))
    target = target // 128 * 128
    for tf in range(target, 127, -128):
        if d_ff_p % tf == 0:
            return tf
    return 128


def _vmem_estimate(tile_m, tile_f, d_model, x_bytes, mxu_bytes):
    """Approximate VMEM working set incl. double buffers and implicit f32 temporaries."""
    weights = 2 * 3 * d_model * tile_f * mxu_bytes   # double-buffered Wi0', Wi1', Wo tiles
    io = 2 * 2 * tile_m * d_model * x_bytes          # double-buffered x + out row tiles
    scratch = tile_m * d_model * (mxu_bytes + 4)     # cached `normed` + f32 accumulator
    temps = 3 * tile_m * tile_f * 4                  # f32 gate / lin / gated intermediates
    return weights + io + scratch + temps


def _t5_ff_kernel(x_ref, wi0_ref, wi1_ref, wo_ref, o_ref, normed_ref, acc_ref):
    k = pl.program_id(1)

    @pl.when(k == 0)
    def _init():
        # T5LayerNorm (RMSNorm, no mean subtraction / bias).  The ln scale is folded into the
        # Wi0/Wi1 rows at weight-prep time, so only the rsqrt(mean(x^2)) factor is applied here,
        # once per row tile, then cached in the MXU operand dtype (matches .type_as behaviour).
        xf = x_ref[...].astype(jnp.float32)
        var = jnp.mean(xf * xf, axis=-1, keepdims=True)
        normed_ref[...] = (xf * jax.lax.rsqrt(var + LN_EPS)).astype(normed_ref.dtype)
        acc_ref[...] = jnp.zeros_like(acc_ref)

    normed = normed_ref[...]

    # --- T5DenseGatedActDense, d_ff tile k: two narrow dots; consume the f32 gate immediately ---
    h_gate = jnp.dot(normed, wi0_ref[...], preferred_element_type=jnp.float32)
    # gelu_new (tanh approximation), f32 elementwise (VPU + EUP)
    g = 0.5 * h_gate * (1.0 + jnp.tanh(_GELU_C * (h_gate + 0.044715 * h_gate * h_gate * h_gate)))
    h_lin = jnp.dot(normed, wi1_ref[...], preferred_element_type=jnp.float32)
    h = (g * h_lin).astype(wo_ref.dtype)

    # TODO(synk): dropout (inner and outer) is identity in eval mode; no RNG applied.
    acc_ref[...] += jnp.dot(h, wo_ref[...], preferred_element_type=jnp.float32)

    @pl.when(k == pl.num_programs(1) - 1)
    def _finalize():
        # residual add in f32, store in the hidden-state dtype (lane-dense d_model last)
        o_ref[...] = (x_ref[...].astype(jnp.float32) + acc_ref[...]).astype(o_ref.dtype)


def prepare_t5_ff_weights(ln_weight, wi0, wi1, wo, mxu_dtype=None):
    """One-time weight prep (hoist to module init / cache the result):
    fold the LayerNorm scale into Wi0/Wi1 rows, zero-pad d_ff to a 128 multiple (exactly
    neutral through the gated FFN) and cast to the MXU operand dtype."""
    if mxu_dtype is None:
        mxu_dtype = wi0.dtype
    d_model, d_ff = wi0.shape
    d_ff_p = _round_up(d_ff, 128)
    lnw = ln_weight.astype(jnp.float32).reshape(d_model, 1)
    wi0_f = lnw * wi0.astype(jnp.float32)
    wi1_f = lnw * wi1.astype(jnp.float32)
    wo_f = wo
    if d_ff_p != d_ff:
        pad = d_ff_p - d_ff
        wi0_f = jnp.pad(wi0_f, ((0, 0), (0, pad)))
        wi1_f = jnp.pad(wi1_f, ((0, 0), (0, pad)))
        wo_f = jnp.pad(wo_f, ((0, pad), (0, 0)))
    wo_f = wo_f if wo_f.dtype == mxu_dtype else wo_f.astype(mxu_dtype)
    return wi0_f.astype(mxu_dtype), wi1_f.astype(mxu_dtype), wo_f


def t5_layer_ff_prepared(x, wi0_p, wi1_p, wo_p, *, tile_m=None, tile_f=None,
                         vmem_limit_bytes=None):
    """Apply T5LayerFF. x: [..., d_model]; prepared weights from prepare_t5_ff_weights."""
    orig_shape = x.shape
    d_model = orig_shape[-1]
    rows = math.prod(orig_shape[:-1])
    x2 = x.reshape(rows, d_model)
    d_ff_p = wi0_p.shape[1]
    mxu_dtype = wi0_p.dtype

    tm_d, tf_d, vmem_d, min_row_tiles = _chip_defaults()
    tile_m = tm_d if tile_m is None else tile_m
    tile_f = tf_d if tile_f is None else tile_f
    vmem_limit_bytes = vmem_d if vmem_limit_bytes is None else vmem_limit_bytes

    # --- d_ff tiling: largest 128-multiple <= target that divides the padded d_ff ---
    tile_f = _pick_tile_f(d_ff_p, tile_f)

    # --- row tiling: sublane-aligned; keep >= min_row_tiles tiles so both v7x TCs get work ---
    row_align = {4: 8, 2: 16, 1: 32}.get(jnp.dtype(x.dtype).itemsize, 8)
    if rows <= tile_m * min_row_tiles:
        tile_m = _round_up(max(1, (rows + min_row_tiles - 1) // min_row_tiles), row_align)
    else:
        tile_m = _round_up(tile_m, row_align)

    # --- shrink tiles if the double-buffered working set exceeds the VMEM budget ---
    x_bytes = jnp.dtype(x.dtype).itemsize
    mxu_bytes = jnp.dtype(mxu_dtype).itemsize
    for _ in range(16):
        if _vmem_estimate(tile_m, tile_f, d_model, x_bytes, mxu_bytes) <= vmem_limit_bytes:
            break
        new_m = _round_up(max(tile_m // 2, row_align), row_align)
        if tile_m >= tile_f and new_m < tile_m:
            tile_m = new_m
        elif tile_f > 128:
            tile_f = _pick_tile_f(d_ff_p, max(128, tile_f // 2))
        elif new_m < tile_m:
            tile_m = new_m
        else:
            break

    rows_p = _round_up(rows, tile_m)
    n_m = rows_p // tile_m
    n_k = d_ff_p // tile_f

    # Zero row padding is exactly neutral through the gated FFN (and sliced off below).
    x_p = jnp.pad(x2, ((0, rows_p - rows), (0, 0))) if rows_p != rows else x2

    out = pl.pallas_call(
        _t5_ff_kernel,
        out_shape=jax.ShapeDtypeStruct((rows_p, d_model), x.dtype),
        grid=(n_m, n_k),
        in_specs=[
            pl.BlockSpec((tile_m, d_model), lambda m, k: (m, 0)),   # x row tile (resident over k)
            pl.BlockSpec((d_model, tile_f), lambda m, k: (0, k)),   # Wi0' tile (ln folded)
            pl.BlockSpec((d_model, tile_f), lambda m, k: (0, k)),   # Wi1' tile (ln folded)
            pl.BlockSpec((tile_f, d_model), lambda m, k: (k, 0)),   # Wo tile
        ],
        out_specs=pl.BlockSpec((tile_m, d_model), lambda m, k: (m, 0)),
        scratch_shapes=[
            pltpu.VMEM((tile_m, d_model), mxu_dtype),     # cached `normed`
            pltpu.VMEM((tile_m, d_model), jnp.float32),   # f32 FF accumulator
        ],
        compiler_params=pltpu.CompilerParams(
            dimension_semantics=("parallel", "arbitrary"),
            vmem_limit_bytes=int(vmem_limit_bytes),
        ),
    )(x_p, wi0_p, wi1_p, wo_p)

    out = out[:rows] if rows_p != rows else out
    return out.reshape(orig_shape)


def t5_layer_ff(x, ln_weight, wi0, wi1, wo, **kwargs):
    """Convenience wrapper.  In real use, call prepare_t5_ff_weights ONCE at module init and
    keep reusing t5_layer_ff_prepared; this path re-prepares the weights on every call."""
    wi0_p, wi1_p, wo_p = prepare_t5_ff_weights(ln_weight, wi0, wi1, wo)
    return t5_layer_ff_prepared(x, wi0_p, wi1_p, wo_p, **kwargs)


def _reference(x, ln_weight, wi0, wi1, wo, mxu_dtype=jnp.float32):
    orig_shape = x.shape
    xf = x.reshape(-1, orig_shape[-1]).astype(jnp.float32)
    var = jnp.mean(xf * xf, axis=-1, keepdims=True)
    normed = (ln_weight.astype(jnp.float32) * (xf * jax.lax.rsqrt(var + LN_EPS))).astype(mxu_dtype)
    h0 = jnp.dot(normed, wi0.astype(mxu_dtype), preferred_element_type=jnp.float32)
    h1 = jnp.dot(normed, wi1.astype(mxu_dtype), preferred_element_type=jnp.float32)
    g = 0.5 * h0 * (1.0 + jnp.tanh(_GELU_C * (h0 + 0.044715 * h0 ** 3)))
    h = (g * h1).astype(mxu_dtype)
    ff = jnp.dot(h, wo.astype(mxu_dtype), preferred_element_type=jnp.float32)
    return (xf + ff).astype(x.dtype).reshape(orig_shape)


if __name__ == "__main__":
    key = jax.random.PRNGKey(0)

    def make_inputs(shape, d_ff, dtype, k):
        d_model = shape[-1]
        k_x, k_ln, k_w0, k_w1, k_wo = jax.random.split(k, 5)
        x = jax.random.normal(k_x, shape, dtype=jnp.float32).astype(dtype)
        ln_w = (1.0 + 0.1 * jax.random.normal(k_ln, (d_model,), dtype=jnp.float32)).astype(dtype)
        wi0 = (0.1 * jax.random.normal(k_w0, (d_model, d_ff), dtype=jnp.float32)).astype(dtype)
        wi1 = (0.1 * jax.random.normal(k_w1, (d_model, d_ff), dtype=jnp.float32)).astype(dtype)
        wo = (0.1 * jax.random.normal(k_wo, (d_ff, d_model), dtype=jnp.float32)).astype(dtype)
        return x, ln_w, wi0, wi1, wo

    k1, k2, k3 = jax.random.split(key, 3)

    # 1) module-like shape (batch=2, seq=8, d_model=32, d_ff=64), f32, single tile.
    x, ln_w, wi0, wi1, wo = make_inputs((2, 8, 32), 64, jnp.float32, k1)
    out = jax.block_until_ready(t5_layer_ff(x, ln_w, wi0, wi1, wo))
    ref = _reference(x, ln_w, wi0, wi1, wo)
    assert out.shape == x.shape
    assert jnp.allclose(out, ref, atol=1e-3, rtol=1e-3), "f32 single-tile mismatch"

    # 2) multi-tile grid with row + d_ff padding (rows 20 -> 32, d_ff 192 -> 256), f32.
    x, ln_w, wi0, wi1, wo = make_inputs((20, 128), 192, jnp.float32, k2)
    out = jax.block_until_ready(t5_layer_ff(x, ln_w, wi0, wi1, wo, tile_m=16, tile_f=128))
    ref = _reference(x, ln_w, wi0, wi1, wo)
    assert out.shape == (20, 128)
    assert jnp.allclose(out, ref, atol=1e-3, rtol=1e-3), "f32 multi-tile mismatch"

    # 3) bf16 path; weight prep hoisted (done once at "module init", kernel applied twice).
    x, ln_w, wi0, wi1, wo = make_inputs((20, 128), 192, jnp.bfloat16, k3)
    wi0_p, wi1_p, wo_p = prepare_t5_ff_weights(ln_w, wi0, wi1, wo)
    out = jax.block_until_ready(
        t5_layer_ff_prepared(x, wi0_p, wi1_p, wo_p, tile_m=16, tile_f=128))
    out2 = jax.block_until_ready(t5_layer_ff_prepared(x, wi0_p, wi1_p, wo_p))  # chip-default tiles
    ref = _reference(x, ln_w, wi0, wi1, wo, mxu_dtype=jnp.bfloat16)
    assert jnp.allclose(out.astype(jnp.float32), ref.astype(jnp.float32),
                        atol=4e-2, rtol=4e-2), "bf16 mismatch"
    assert jnp.allclose(out2.astype(jnp.float32), ref.astype(jnp.float32),
                        atol=4e-2, rtol=4e-2), "bf16 (chip-default tiles) mismatch"

    print("KERNEL_OK")
</pallas_src>

<mosaic_0001>
module attributes {stable_mosaic.version = 11 : i64} {
  func.func @_t5_ff_kernel(%arg0: i32, %arg1: i32, %arg2: memref<8x32xf32, #tpu.memory_space<vmem>>, %arg3: memref<32x128xf32, #tpu.memory_space<vmem>>, %arg4: memref<32x128xf32, #tpu.memory_space<vmem>>, %arg5: memref<128x32xf32, #tpu.memory_space<vmem>>, %arg6: memref<8x32xf32, #tpu.memory_space<vmem>>, %arg7: memref<8x32xf32, #tpu.memory_space<vmem>>, %arg8: memref<8x32xf32, #tpu.memory_space<vmem>>) attributes {dimension_semantics = [#tpu.dimension_semantics<parallel>, #tpu.dimension_semantics<arbitrary>], iteration_bounds = array<i64: 2, 1>, scalar_prefetch = 0 : i64, scratch_operands = 2 : i64, tpu.core_type = #tpu.core_type<tc>, window_params = [{transform_indices = @transform_0, window_bounds = array<i64: 8, 32>}, {transform_indices = @transform_1, window_bounds = array<i64: 32, 128>}, {transform_indices = @transform_2, window_bounds = array<i64: 32, 128>}, {transform_indices = @transform_3, window_bounds = array<i64: 128, 32>}, {transform_indices = @transform_4, window_bounds = array<i64: 8, 32>}]} {
    %c0_i32 = arith.constant 0 : i32
    %0 = arith.cmpi eq, %arg1, %c0_i32 : i32
    %1 = arith.extui %0 : i1 to i32
    %c0_i32_0 = arith.constant 0 : i32
    %2 = arith.cmpi ne, %1, %c0_i32_0 : i32
    scf.if %2 {
      %c0_20 = arith.constant 0 : index
      %c0_21 = arith.constant 0 : index
      %30 = vector.load %arg2[%c0_20, %c0_21] : memref<8x32xf32, #tpu.memory_space<vmem>>, vector<8x32xf32>
      %31 = arith.mulf %30, %30 : vector<8x32xf32>
      %cst_22 = arith.constant dense<0.000000e+00> : vector<8xf32>
      %32 = vector.multi_reduction <add>, %31, %cst_22 [1] : vector<8x32xf32> to vector<8xf32>
      %33 = vector.shape_cast %32 : vector<8xf32> to vector<8x1xf32>
      %cst_23 = arith.constant 3.200000e+01 : f32
      %34 = vector.broadcast %cst_23 : f32 to vector<8x1xf32>
      %35 = arith.divf %33, %34 : vector<8x1xf32>
      %cst_24 = arith.constant 9.99999997E-7 : f32
      %36 = vector.broadcast %cst_24 : f32 to vector<8x1xf32>
      %37 = arith.addf %35, %36 : vector<8x1xf32>
      %38 = math.rsqrt %37 : vector<8x1xf32>
      %39 = vector.broadcast %38 : vector<8x1xf32> to vector<8x32xf32>
      %40 = arith.mulf %30, %39 : vector<8x32xf32>
      %c0_25 = arith.constant 0 : index
      %c0_26 = arith.constant 0 : index
      %41 = vector.load %arg7[%c0_25, %c0_26] : memref<8x32xf32, #tpu.memory_space<vmem>>, vector<8x32xf32>
      tpu.vector_store %arg7[%c0_25, %c0_26], %40 {strides = array<i32>} : memref<8x32xf32, #tpu.memory_space<vmem>>, vector<8x32xf32>,
      %cst_27 = arith.constant 0.000000e+00 : f32
      %42 = vector.broadcast %cst_27 : f32 to vector<8x32xf32>
      %c0_28 = arith.constant 0 : index
      %c0_29 = arith.constant 0 : index
      %43 = vector.load %arg8[%c0_28, %c0_29] : memref<8x32xf32, #tpu.memory_space<vmem>>, vector<8x32xf32>
      tpu.vector_store %arg8[%c0_28, %c0_29], %42 {strides = array<i32>} : memref<8x32xf32, #tpu.memory_space<vmem>>, vector<8x32xf32>,
    } else {
    }
    %c0 = arith.constant 0 : index
    %c0_1 = arith.constant 0 : index
    %3 = vector.load %arg7[%c0, %c0_1] : memref<8x32xf32, #tpu.memory_space<vmem>>, vector<8x32xf32>
    %c0_2 = arith.constant 0 : index
    %c0_3 = arith.constant 0 : index
    %4 = vector.load %arg3[%c0_2, %c0_3] : memref<32x128xf32, #tpu.memory_space<vmem>>, vector<32x128xf32>
    %cst = arith.constant dense<0.000000e+00> : vector<8x128xf32>
    %5 = tpu.matmul %3, %4, %cst {dimension_numbers = #tpu.dot_dimension_numbers<[1], [0], [0], [1], [0, 0, 1, 1], [], []>} : vector<8x32xf32>, vector<32x128xf32>, vector<8x128xf32> -> vector<8x128xf32>
    %cst_4 = arith.constant 5.000000e-01 : f32
    %6 = vector.broadcast %cst_4 : f32 to vector<8x128xf32>
    %7 = arith.mulf %6, %5 : vector<8x128xf32>
    %cst_5 = arith.constant 4.471500e-02 : f32
    %8 = vector.broadcast %cst_5 : f32 to vector<8x128xf32>
    %9 = arith.mulf %8, %5 : vector<8x128xf32>
    %10 = arith.mulf %9, %5 : vector<8x128xf32>
    %11 = arith.mulf %10, %5 : vector<8x128xf32>
    %12 = arith.addf %5, %11 : vector<8x128xf32>
    %cst_6 = arith.constant 0.797884583 : f32
    %13 = vector.broadcast %cst_6 : f32 to vector<8x128xf32>
    %14 = arith.mulf %13, %12 : vector<8x128xf32>
    %15 = math.tanh %14 : vector<8x128xf32>
    %cst_7 = arith.constant 1.000000e+00 : f32
    %16 = vector.broadcast %cst_7 : f32 to vector<8x128xf32>
    %17 = arith.addf %16, %15 : vector<8x128xf32>
    %18 = arith.mulf %7, %17 : vector<8x128xf32>
    %c0_8 = arith.constant 0 : index
    %c0_9 = arith.constant 0 : index
    %19 = vector.load %arg4[%c0_8, %c0_9] : memref<32x128xf32, #tpu.memory_space<vmem>>, vector<32x128xf32>
    %cst_10 = arith.constant dense<0.000000e+00> : vector<8x128xf32>
    %20 = tpu.matmul %3, %19, %cst_10 {dimension_numbers = #tpu.dot_dimension_numbers<[1], [0], [0], [1], [0, 0, 1, 1], [], []>} : vector<8x32xf32>, vector<32x128xf32>, vector<8x128xf32> -> vector<8x128xf32>
    %21 = arith.mulf %18, %20 : vector<8x128xf32>
    %c0_11 = arith.constant 0 : index
    %c0_12 = arith.constant 0 : index
    %22 = vector.load %arg8[%c0_11, %c0_12] : memref<8x32xf32, #tpu.memory_space<vmem>>, vector<8x32xf32>
    %c0_13 = arith.constant 0 : index
    %c0_14 = arith.constant 0 : index
    %23 = vector.load %arg5[%c0_13, %c0_14] : memref<128x32xf32, #tpu.memory_space<vmem>>, vector<128x32xf32>
    %cst_15 = arith.constant dense<0.000000e+00> : vector<8x32xf32>
    %24 = tpu.matmul %21, %23, %cst_15 {dimension_numbers = #tpu.dot_dimension_numbers<[1], [0], [0], [1], [0, 0, 1, 1], [], []>} : vector<8x128xf32>, vector<128x32xf32>, vector<8x32xf32> -> vector<8x32xf32>
    %25 = arith.addf %22, %24 : vector<8x32xf32>
    %c0_16 = arith.constant 0 : index
    %c0_17 = arith.constant 0 : index
    %26 = vector.load %arg8[%c0_16, %c0_17] : memref<8x32xf32, #tpu.memory_space<vmem>>, vector<8x32xf32>
    tpu.vector_store %arg8[%c0_16, %c0_17], %25 {strides = array<i32>} : memref<8x32xf32, #tpu.memory_space<vmem>>, vector<8x32xf32>,
    %c0_i32_18 = arith.constant 0 : i32
    %27 = arith.cmpi eq, %arg1, %c0_i32_18 : i32
    %28 = arith.extui %27 : i1 to i32
    %c0_i32_19 = arith.constant 0 : i32
    %29 = arith.cmpi ne, %28, %c0_i32_19 : i32
    scf.if %29 {
      %c0_20 = arith.constant 0 : index
      %c0_21 = arith.constant 0 : index
      %30 = vector.load %arg2[%c0_20, %c0_21] : memref<8x32xf32, #tpu.memory_space<vmem>>, vector<8x32xf32>
      %c0_22 = arith.constant 0 : index
      %c0_23 = arith.constant 0 : index
      %31 = vector.load %arg8[%c0_22, %c0_23] : memref<8x32xf32, #tpu.memory_space<vmem>>, vector<8x32xf32>
      %32 = arith.addf %30, %31 : vector<8x32xf32>
      %c0_24 = arith.constant 0 : index
      %c0_25 = arith.constant 0 : index
      %33 = vector.load %arg6[%c0_24, %c0_25] : memref<8x32xf32, #tpu.memory_space<vmem>>, vector<8x32xf32>
      tpu.vector_store %arg6[%c0_24, %c0_25], %32 {strides = array<i32>} : memref<8x32xf32, #tpu.memory_space<vmem>>, vector<8x32xf32>,
    } else {
    }
    return
  }
  func.func @transform_0(%arg0: i32, %arg1: i32) -> (i32, i32) {
    %c0_i32 = arith.constant 0 : i32
    %c0_i32_0 = arith.constant 0 : i32
    return %arg0, %c0_i32 : i32, i32
  }
  func.func @transform_1(%arg0: i32, %arg1: i32) -> (i32, i32) {
    %c0_i32 = arith.constant 0 : i32
    %c0_i32_0 = arith.constant 0 : i32
    return %c0_i32, %arg1 : i32, i32
  }
  func.func @transform_2(%arg0: i32, %arg1: i32) -> (i32, i32) {
    %c0_i32 = arith.constant 0 : i32
    %c0_i32_0 = arith.constant 0 : i32
    return %c0_i32, %arg1 : i32, i32
  }
  func.func @transform_3(%arg0: i32, %arg1: i32) -> (i32, i32) {
    %c0_i32 = arith.constant 0 : i32
    %c0_i32_0 = arith.constant 0 : i32
    return %arg1, %c0_i32 : i32, i32
  }
  func.func @transform_4(%arg0: i32, %arg1: i32) -> (i32, i32) {
    %c0_i32 = arith.constant 0 : i32
    %c0_i32_0 = arith.constant 0 : i32
    return %arg0, %c0_i32 : i32, i32
  }
}

</mosaic_0001>

<llo_original>
// kernel: tpu_custom_call.1
$region0: #{tpu_custom_call.1}
  #allocation0 [shape = 'u32[]', space=smem, size = 0x4, offset = 0x4, fixed_abs, tag = 'smem constant byte address 0x4 - core index']
  #allocation1 [shape = 'u32[144,128]{1,0:T(1,128)}', space=vmem, size = 0x12000, scoped, tag = 'internal scratch']
  #allocation2 [shape = 'f32[8,32]{1,0:T(8,128)}', space=vmem, size = 0x1000, scoped, tag = 'scratch operand']
  #allocation3 [shape = 'f32[8,32]{1,0:T(8,128)}', space=vmem, size = 0x1000, scoped, tag = 'scratch operand']
  %s0 = inlined_call_operand.vmem [shape: f32[16,32], index: 0, kind: input, shape index: {}]
  %s1 = inlined_call_operand.vmem [shape: f32[32,128], index: 1, kind: input, shape index: {}]
  %s2 = inlined_call_operand.vmem [shape: f32[32,128], index: 2, kind: input, shape index: {}]
  %s3 = inlined_call_operand.vmem [shape: f32[128,32], index: 3, kind: input, shape index: {}]
  %s4 = inlined_call_operand.hbm [shape: f32[16,32], index: 4, kind: output, shape index: {}]
  %s5 = sld [smem:[#allocation0]]
  $region57: #{tpu_custom_call.1} parent=0
    _
  %s7 = ssub.s32 1, %s5
  %s8 = scalar_select 0, %s7, %s5
  $region1: #{tpu_custom_call.1} parent=0
    #allocation4 [shape = 'u8[8192]{0}', space=vmem, size = 0x2000, scoped, tag = 'output window, operand 0']
    #allocation5 [shape = 's32[2]{0}', space=sflag, size = 0x8, scoped, tag = 'scoped memory for tpu_custom_call.1']
    %9 = vsyncpa [#allocation5], 0
    %s10 = scalar_lea.sflag [#allocation5], 1
    %11 = vsyncpa %s10, 0
    loop: start=0, step=1, limit=4
    $region2: #{tpu_custom_call.1} parent=1 // loop_pre_header
      _
    $region3: #{tpu_custom_call.1} parent=1 // loop_header
      %s13 = sphi 0, %s17
      %p14 = scmp.ge.s32.totalorder %s13, 4
      %s20 = sphi 0, %s32
      %s21 = sphi 0, %s28
      %s22 = sphi 0, %s20
      %s23 = sphi 0, %s21
      %s24 = sphi 0, %s22
      %s25 = sphi 0, %s23
      %s35 = sphi 0, %s37
      %s38 = sphi 0, %s35
      %s39 = sphi 0, %s38
      %s55 = sphi 0, %s39
      %s61 = sphi 0, %s63
      %s64 = sphi 0, %s61
      %s65 = sphi 0, %s64
      %s81 = sphi 0, %s65
      %s87 = sphi 0, %s89
      %s90 = sphi 0, %s87
      %s91 = sphi 0, %s90
      %s107 = sphi 0, %s91
      %s113 = sphi 0, %s115
      %s116 = sphi 0, %s113
      %s117 = sphi 0, %s116
      %s133 = sphi 0, %s117
      %s139 = sphi 0, %s141
      %s142 = sphi 0, %s139
      %s143 = sphi 0, %s142
      %s159 = sphi 0, %s143
    $region4: #{tpu_custom_call.1} parent=1 // loop_header_branch
      %16 = sbr.rel (%p14) target = $region8
    $region5: #{tpu_custom_call.1} parent=1 // loop_body
      %s18 = ssub.s32 %s13, 1
      %s19 = ssub.s32 %s13, 2
      %s26 = sadd.s32 1, %s21
      %p27 = scmp.ge.s32.totalorder %s26, 1
      %s28 = scalar_select %p27, 0, %s26
      %s29 = sadd.s32 1, %s20
      %s30 = scalar_select %p27, %s29, %s20
      %p31 = scmp.ge.s32.totalorder %s30, 2
      %s32 = scalar_select %p31, 0, %s30
      %s33 = ssub.s32 %s20, %s32
      %p34 = scmp.eq.s32.totalorder %s33, 0
      %s36 = sadd.s32 %s35, 1
      %s37 = scalar_select %p34, %s35, %s36
      %p40 = pneg %p34
      %p41 = scmp.eq.s32.totalorder %s13, 1
      %p42 = por %p40, %p41
      %p43 = scmp.ne.s32.totalorder %s35, %s38
      %p44 = scmp.eq.s32.totalorder %s13, 0
      %p45 = por %p43, %p44
      %p46 = scmp.ne.s32.totalorder %s35, %s38
      %p47 = scmp.eq.s32.totalorder %s18, 1
      %p48 = por %p46, %p47
      %p49 = scmp.ne.s32.totalorder %s38, %s39
      %p50 = scmp.eq.s32.totalorder %s18, 0
      %p51 = por %p49, %p50
      %p52 = scmp.ne.s32.totalorder %s38, %s39
      %p53 = scmp.eq.s32.totalorder %s19, 1
      %p54 = por %p52, %p53
      %p56 = scmp.ne.s32.totalorder %s39, %s55
      %p57 = scmp.eq.s32.totalorder %s19, 0
      %p58 = por %p56, %p57
      %s59 = ssub.s32 %s21, %s28
      %p60 = scmp.eq.s32.totalorder %s59, 0
      %s62 = sadd.s32 %s61, 1
      %s63 = scalar_select %p60, %s61, %s62
      %p66 = pneg %p60
      %p67 = scmp.eq.s32.totalorder %s13, 1
      %p68 = por %p66, %p67
      %p69 = scmp.ne.s32.totalorder %s61, %s64
      %p70 = scmp.eq.s32.totalorder %s13, 0
      %p71 = por %p69, %p70
      %p72 = scmp.ne.s32.totalorder %s61, %s64
      %p73 = scmp.eq.s32.totalorder %s18, 1
      %p74 = por %p72, %p73
      %p75 = scmp.ne.s32.totalorder %s64, %s65
      %p76 = scmp.eq.s32.totalorder %s18, 0
      %p77 = por %p75, %p76
      %p78 = scmp.ne.s32.totalorder %s64, %s65
      %p79 = scmp.eq.s32.totalorder %s19, 1
      %p80 = por %p78, %p79
      %p82 = scmp.ne.s32.totalorder %s65, %s81
      %p83 = scmp.eq.s32.totalorder %s19, 0
      %p84 = por %p82, %p83
      %s85 = ssub.s32 %s21, %s28
      %p86 = scmp.eq.s32.totalorder %s85, 0
      %s88 = sadd.s32 %s87, 1
      %s89 = scalar_select %p86, %s87, %s88
      %p92 = pneg %p86
      %p93 = scmp.eq.s32.totalorder %s13, 1
      %p94 = por %p92, %p93
      %p95 = scmp.ne.s32.totalorder %s87, %s90
      %p96 = scmp.eq.s32.totalorder %s13, 0
      %p97 = por %p95, %p96
      %p98 = scmp.ne.s32.totalorder %s87, %s90
      %p99 = scmp.eq.s32.totalorder %s18, 1
      %p100 = por %p98, %p99
      %p101 = scmp.ne.s32.totalorder %s90, %s91
      %p102 = scmp.eq.s32.totalorder %s18, 0
      %p103 = por %p101, %p102
      %p104 = scmp.ne.s32.totalorder %s90, %s91
      %p105 = scmp.eq.s32.totalorder %s19, 1
      %p106 = por %p104, %p105
      %p108 = scmp.ne.s32.totalorder %s91, %s107
      %p109 = scmp.eq.s32.totalorder %s19, 0
      %p110 = por %p108, %p109
      %s111 = ssub.s32 %s21, %s28
      %p112 = scmp.eq.s32.totalorder %s111, 0
      %s114 = sadd.s32 %s113, 1
      %s115 = scalar_select %p112, %s113, %s114
      %p118 = pneg %p112
      %p119 = scmp.eq.s32.totalorder %s13, 1
      %p120 = por %p118, %p119
      %p121 = scmp.ne.s32.totalorder %s113, %s116
      %p122 = scmp.eq.s32.totalorder %s13, 0
      %p123 = por %p121, %p122
      %p124 = scmp.ne.s32.totalorder %s113, %s116
      %p125 = scmp.eq.s32.totalorder %s18, 1
      %p126 = por %p124, %p125
      %p127 = scmp.ne.s32.totalorder %s116, %s117
      %p128 = scmp.eq.s32.totalorder %s18, 0
      %p129 = por %p127, %p128
      %p130 = scmp.ne.s32.totalorder %s116, %s117
      %p131 = scmp.eq.s32.totalorder %s19, 1
      %p132 = por %p130, %p131
      %p134 = scmp.ne.s32.totalorder %s117, %s133
      %p135 = scmp.eq.s32.totalorder %s19, 0
      %p136 = por %p134, %p135
      %s137 = ssub.s32 %s20, %s32
      %p138 = scmp.eq.s32.totalorder %s137, 0
      %s140 = sadd.s32 %s139, 1
      %s141 = scalar_select %p138, %s139, %s140
      %p144 = pneg %p138
      %p145 = scmp.eq.s32.totalorder %s13, 1
      %p146 = por %p144, %p145
      %p147 = scmp.ne.s32.totalorder %s139, %s142
      %p148 = scmp.eq.s32.totalorder %s13, 0
      %p149 = por %p147, %p148
      %p150 = scmp.ne.s32.totalorder %s139, %s142
      %p151 = scmp.eq.s32.totalorder %s18, 1
      %p152 = por %p150, %p151
      %p153 = scmp.ne.s32.totalorder %s142, %s143
      %p154 = scmp.eq.s32.totalorder %s18, 0
      %p155 = por %p153, %p154
      %p156 = scmp.ne.s32.totalorder %s142, %s143
      %p157 = scmp.eq.s32.totalorder %s19, 1
      %p158 = por %p156, %p157
      %p160 = scmp.ne.s32.totalorder %s143, %s159
      %p161 = scmp.eq.s32.totalorder %s19, 0
      %p162 = por %p160, %p161
      %p163 = scmp.le.s32.totalorder 1, %s13
      %p164 = scmp.lt.s32.totalorder %s13, 3
      %p165 = pnand %p163, %p164
      %p166 = pneg %p165
      // Predicated region
      $region9: #{tpu_custom_call.1} parent=5 // pred_check
        _
      $region10: #{tpu_custom_call.1} parent=5 // pred_check_branch
        %168 = sbr.rel (%p165) target = $region12
      $region11: #{tpu_custom_call.1} parent=5 // pred_region
        %s169 = ssub.s32 %s13, 1
        // Predicated region
        $region13: #{tpu_custom_call.1} parent=11 // pred_check
          %p170 = pneg %p77
        $region14: #{tpu_custom_call.1} parent=11 // pred_check_branch
          %172 = sbr.rel (%p170) target = $region16
        $region15: #{tpu_custom_call.1} parent=11 // pred_region
          %p173 = scmp.lt.s32.totalorder %s23, 0
          %s174 = scalar_select %p173, %s23, 0
          %s175 = smul.addr %s174, 8
          %s176 = scalar_lea.vmem %s1, %s175
        $region16: #{tpu_custom_call.1} parent=11 // pred_fallthru
          _
        // Predicated region
        $region17: #{tpu_custom_call.1} parent=11 // pred_check
          %p177 = pneg %p103
        $region18: #{tpu_custom_call.1} parent=11 // pred_check_branch
          %179 = sbr.rel (%p177) target = $region20
        $region19: #{tpu_custom_call.1} parent=11 // pred_region
          %p180 = scmp.lt.s32.totalorder %s23, 0
          %s181 = scalar_select %p180, %s23, 0
          %s182 = smul.addr %s181, 8
          %s183 = scalar_lea.vmem %s2, %s182
        $region20: #{tpu_custom_call.1} parent=11 // pred_fallthru
          _
        // Predicated region
        $region21: #{tpu_custom_call.1} parent=11 // pred_check
          %p184 = pneg %p129
        $region22: #{tpu_custom_call.1} parent=11 // pred_check_branch
          %186 = sbr.rel (%p184) target = $region24
        $region23: #{tpu_custom_call.1} parent=11 // pred_region
          %s187 = smul.u32 16, %s23
          %p188 = scmp.lt.s32.totalorder %s187, 15
          %s189 = scalar_select %p188, %s187, 15
          %s190 = smul.addr %s189, 8
          %s191 = scalar_lea.vmem %s3, %s190
          %s192 = smul.u32 16, %s23
        $region24: #{tpu_custom_call.1} parent=11 // pred_fallthru
          _
      $region12: #{tpu_custom_call.1} parent=5 // pred_fallthru
        _
      %p193 = scmp.lt.s32.totalorder %s13, 2
      // Predicated region
      $region25: #{tpu_custom_call.1} parent=5 // pred_check
        %p194 = pneg %p193
      $region26: #{tpu_custom_call.1} parent=5 // pred_check_branch
        %196 = sbr.rel (%p194) target = $region28
      $region27: #{tpu_custom_call.1} parent=5 // pred_region
        // Predicated region
        $region29: #{tpu_custom_call.1} parent=27 // pred_check
          %p197 = pneg %p45
        $region30: #{tpu_custom_call.1} parent=27 // pred_check_branch
          %199 = sbr.rel (%p197) target = $region32
        $region31: #{tpu_custom_call.1} parent=27 // pred_region
          %p200 = scmp.lt.s32.totalorder %s20, 1
          %s201 = scalar_select %p200, %s20, 1
          %s202 = smul.addr %s201, 8
          %s203 = scalar_lea.vmem %s0, %s202
        $region32: #{tpu_custom_call.1} parent=27 // pred_fallthru
          _
      $region28: #{tpu_custom_call.1} parent=5 // pred_fallthru
        _
      %p204 = scmp.le.s32.totalorder 1, %s13
      %p205 = scmp.lt.s32.totalorder %s13, 3
      %p206 = pnand %p204, %p205
      %p207 = pneg %p206
      // Predicated region
      $region33: #{tpu_custom_call.1} parent=5 // pred_check
        _
      $region34: #{tpu_custom_call.1} parent=5 // pred_check_branch
        %209 = sbr.rel (%p206) target = $region36
      $region35: #{tpu_custom_call.1} parent=5 // pred_region
        %s210 = ssub.s32 %s13, 1
        %p211 = scmp.lt.s32.totalorder %s22, 1
        %s212 = scalar_select %p211, %s22, 1
        %s213 = smul.addr %s212, 8
        %s214 = scalar_lea.vmem %s0, %s213
        %p215 = pneg %p51
        %p216 = pneg %p48
        %p217 = scmp.lt.s32.totalorder %s23, 0
        %s218 = scalar_select %p217, %s23, 0
        %s219 = smul.addr %s218, 8
        %s220 = scalar_lea.vmem %s1, %s219
        %p221 = pneg %p77
        %p222 = pneg %p74
        %p223 = scmp.lt.s32.totalorder %s23, 0
        %s224 = scalar_select %p223, %s23, 0
        %s225 = smul.addr %s224, 8
        %s226 = scalar_lea.vmem %s2, %s225
        %p227 = pneg %p103
        %p228 = pneg %p100
        %s229 = smul.u32 16, %s23
        %p230 = scmp.lt.s32.totalorder %s229, 15
        %s231 = scalar_select %p230, %s229, 15
        %s232 = smul.addr %s231, 8
        %s233 = scalar_lea.vmem %s3, %s232
        %p234 = pneg %p129
        %p235 = pneg %p126
        %p236 = pneg %p155
        %p237 = pneg %p152
        %s238 = sand.u32 %s142, 1
        %s239 = scalar_lea.sflag [#allocation5], %s238
        %s240 = sand.u32 %s142, 1
        %s241 = smul.addr %s240, 8
        %s242 = scalar_lea.vmem [#allocation4], %s241
        %p243 = scmp.lt.s32.totalorder %s22, 1
        %s244 = scalar_select %p243, %s22, 1
        %s245 = smul.addr %s244, 8
        %s246 = scalar_lea.vmem %s0, %s245
        %p247 = scmp.lt.s32.totalorder %s23, 0
        %s248 = scalar_select %p247, %s23, 0
        %s249 = smul.addr %s248, 8
        %s250 = scalar_lea.vmem %s1, %s249
        %p251 = scmp.lt.s32.totalorder %s23, 0
        %s252 = scalar_select %p251, %s23, 0
        %s253 = smul.addr %s252, 8
        %s254 = scalar_lea.vmem %s2, %s253
        %s255 = smul.u32 16, %s23
        %p256 = scmp.lt.s32.totalorder %s255, 15
        %s257 = scalar_select %p256, %s255, 15
        %s258 = smul.addr %s257, 8
        %s259 = scalar_lea.vmem %s3, %s258
        %s260 = smul.u32 16, %s23
        %p261 = scmp.eq.s32.totalorder %s23, 0
        // Predicated region
        $region37: #{tpu_custom_call.1} parent=35 // pred_check
          %p262 = pneg %p261
        $region38: #{tpu_custom_call.1} parent=35 // pred_check_branch
          %264 = sbr.rel (%p262) target = $region40
        $region39: #{tpu_custom_call.1} parent=35 // pred_region
          %v265 = vld [vmem:[%s246] sm:$0xff]
          %v266 = vmul.f32 %v265, %v265
          %vm267 = vcmask 261120
          %v268 = vsel %vm267, %v266, 0.0
          %269 = vadd.xlane.f32.xlu0 %v268
          %v270 = vpop.xlane.xlu0 %269
          %v271 = vrcp.pop 32.0
          %v272 = vmul.f32 %v270, %v271
          %v273 = vadd.f32 %v272, 1e-06
          %v274 = vrsqrt.pop %v273
          %v275 = vmul.f32 %v265, %v274
          %276 = vst.msk [vmem:[#allocation2] sm:$0xff] %vm267, %v275
          %277 = vst.msk [vmem:[#allocation3] sm:$0xff] %vm267, 0.0
        $region40: #{tpu_custom_call.1} parent=35 // pred_fallthru
          _
        %v278 = vld [vmem:[#allocation2] sm:$0xff]
        %v279 = vld [vmem:[%s250] sm:$0xff]
        %v280 = vld [vmem:[%s250 + $0x8] sm:$0xff]
        %v281 = vld [vmem:[%s250 + $0x10] sm:$0xff]
        %v282 = vld [vmem:[%s250 + $0x18] sm:$0xff]
        %vm283 = vcmask 261120
        %v285 = vsel %vm283, %v278, 0
        %287 = vmatprep.subr.mxu0 0.0
        %288 = vmatpush1.msra.mxu0 %v279
        %289 = vmatprep.subr.mxu0 0.0
        %290 = vmatpush1.msra.mxu0 %v280
        %291 = vmatprep.subr.mxu0 0.0
        %292 = vmatpush1.msra.mxu0 %v281
        %293 = vmatprep.subr.mxu0 0.0
        %294 = vmatpush1.msra.mxu0 %v282
        %295 = vmatprep.subr.mxu0 0.0
        %296 = vmatpush1.msra.mxu0 0.0
        %297 = vmatprep.subr.mxu0 0.0
        %298 = vmatpush1.msra.mxu0 0.0
        %299 = vmatprep.subr.mxu0 0.0
        %300 = vmatpush1.msra.mxu0 0.0
        %301 = vmatprep.subr.mxu0 0.0
        %302 = vmatpush1.msra.mxu0 0.0
        %303 = vmatprep.subr.mxu0 0.0
        %304 = vmatpush1.msra.mxu0 0.0
        %305 = vmatprep.subr.mxu0 0.0
        %306 = vmatpush1.msra.mxu0 0.0
        %307 = vmatprep.subr.mxu0 0.0
        %308 = vmatpush1.msra.mxu0 0.0
        %309 = vmatprep.subr.mxu0 0.0
        %310 = vmatpush1.msra.mxu0 0.0
        %311 = vmatprep.subr.mxu0 0.0
        %312 = vmatpush1.msra.mxu0 0.0
        %313 = vmatprep.subr.mxu0 0.0
        %314 = vmatpush1.msra.mxu0 0.0
        %315 = vmatprep.subr.mxu0 0.0
        %316 = vmatpush1.msra.mxu0 0.0
        %317 = vmatprep.subr.mxu0 0.0
        %318 = vmatpush1.msra.mxu0 0.0
        %319 = vmatprep.subr.mxu0 0.0
        %320 = vmatpush1.msra.mxu0 0.0
        %321 = vmatprep.subr.mxu0 0.0
        %322 = vmatpush1.msra.mxu0 0.0
        %323 = vmatprep.subr.mxu0 0.0
        %324 = vmatpush1.msra.mxu0 0.0
        %325 = vmatprep.subr.mxu0 0.0
        %326 = vmatpush1.msra.mxu0 0.0
        %327 = vmatprep.subr.mxu0 0.0
        %328 = vmatpush1.msra.mxu0 0.0
        %329 = vmatprep.subr.mxu0 0.0
        %330 = vmatpush1.msra.mxu0 0.0
        %331 = vmatprep.subr.mxu0 0.0
        %332 = vmatpush1.msra.mxu0 0.0
        %333 = vmatprep.subr.mxu0 0.0
        %334 = vmatpush1.msra.mxu0 0.0
        %335 = vmatprep.subr.mxu0 0.0
        %336 = vmatpush1.msra.mxu0 0.0
        %337 = vmatprep.subr.mxu0 0.0
        %338 = vmatpush1.msra.mxu0 0.0
        %339 = vmatprep.subr.mxu0 0.0
        %340 = vmatpush1.msra.mxu0 0.0
        %341 = vmatprep.subr.mxu0 0.0
        %342 = vmatpush1.msra.mxu0 0.0
        %343 = vmatprep.subr.mxu0 0.0
        %344 = vmatpush1.msra.mxu0 0.0
        %345 = vmatprep.subr.mxu0 0.0
        %346 = vmatpush1.msra.mxu0 0.0
        %347 = vmatprep.subr.mxu0 0.0
        %348 = vmatpush1.msra.mxu0 0.0
        %349 = vmatprep.subr.mxu0 0.0
        %350 = vmatpush1.msra.mxu0 0.0
        %351 = vmatprep.mubr.f32.mxu0 0.0
        %352 = vmatmul.mubr.f32.gmra.mrb[0].mxu0 %v285
        %v353 = vpop.f32.mrb[0].mxu0
        %v354 = vadd.f32 0.0, %v353
        %v355 = vpop.f32.mrb[0].mxu0
        %356 = vdwg.mxu0
        %v357 = vmul.f32 %v354, 0.5
        %v358 = vmul.f32 %v354, 0.044715
        %v359 = vmul.f32 %v358, %v354
        %v360 = vmul.f32 %v359, %v354
        %v361 = vadd.f32 %v354, %v360
        %v362 = vmul.f32 %v361, 0.7978846
        %v363 = vtanh.pop %v362
        %v364 = vadd.f32 %v363, 1.0
        %v365 = vmul.f32 %v357, %v364
        %v366 = vld [vmem:[%s254] sm:$0xff]
        %v367 = vld [vmem:[%s254 + $0x8] sm:$0xff]
        %v368 = vld [vmem:[%s254 + $0x10] sm:$0xff]
        %v369 = vld [vmem:[%s254 + $0x18] sm:$0xff]
        %370 = vmatprep.subr.mxu0 0.0
        %371 = vmatpush1.msra.mxu0 %v366
        %372 = vmatprep.subr.mxu0 0.0
        %373 = vmatpush1.msra.mxu0 %v367
        %374 = vmatprep.subr.mxu0 0.0
        %375 = vmatpush1.msra.mxu0 %v368
        %376 = vmatprep.subr.mxu0 0.0
        %377 = vmatpush1.msra.mxu0 %v369
        %378 = vmatprep.subr.mxu0 0.0
        %379 = vmatpush1.msra.mxu0 0.0
        %380 = vmatprep.subr.mxu0 0.0
        %381 = vmatpush1.msra.mxu0 0.0
        %382 = vmatprep.subr.mxu0 0.0
        %383 = vmatpush1.msra.mxu0 0.0
        %384 = vmatprep.subr.mxu0 0.0
        %385 = vmatpush1.msra.mxu0 0.0
        %386 = vmatprep.subr.mxu0 0.0
        %387 = vmatpush1.msra.mxu0 0.0
        %388 = vmatprep.subr.mxu0 0.0
        %389 = vmatpush1.msra.mxu0 0.0
        %390 = vmatprep.subr.mxu0 0.0
        %391 = vmatpush1.msra.mxu0 0.0
        %392 = vmatprep.subr.mxu0 0.0
        %393 = vmatpush1.msra.mxu0 0.0
        %394 = vmatprep.subr.mxu0 0.0
        %395 = vmatpush1.msra.mxu0 0.0
        %396 = vmatprep.subr.mxu0 0.0
        %397 = vmatpush1.msra.mxu0 0.0
        %398 = vmatprep.subr.mxu0 0.0
        %399 = vmatpush1.msra.mxu0 0.0
        %400 = vmatprep.subr.mxu0 0.0
        %401 = vmatpush1.msra.mxu0 0.0
        %402 = vmatprep.subr.mxu0 0.0
        %403 = vmatpush1.msra.mxu0 0.0
        %404 = vmatprep.subr.mxu0 0.0
        %405 = vmatpush1.msra.mxu0 0.0
        %406 = vmatprep.subr.mxu0 0.0
        %407 = vmatpush1.msra.mxu0 0.0
        %408 = vmatprep.subr.mxu0 0.0
        %409 = vmatpush1.msra.mxu0 0.0
        %410 = vmatprep.subr.mxu0 0.0
        %411 = vmatpush1.msra.mxu0 0.0
        %412 = vmatprep.subr.mxu0 0.0
        %413 = vmatpush1.msra.mxu0 0.0
        %414 = vmatprep.subr.mxu0 0.0
        %415 = vmatpush1.msra.mxu0 0.0
        %416 = vmatprep.subr.mxu0 0.0
        %417 = vmatpush1.msra.mxu0 0.0
        %418 = vmatprep.subr.mxu0 0.0
        %419 = vmatpush1.msra.mxu0 0.0
        %420 = vmatprep.subr.mxu0 0.0
        %421 = vmatpush1.msra.mxu0 0.0
        %422 = vmatprep.subr.mxu0 0.0
        %423 = vmatpush1.msra.mxu0 0.0
        %424 = vmatprep.subr.mxu0 0.0
        %425 = vmatpush1.msra.mxu0 0.0
        %426 = vmatprep.subr.mxu0 0.0
        %427 = vmatpush1.msra.mxu0 0.0
        %428 = vmatprep.subr.mxu0 0.0
        %429 = vmatpush1.msra.mxu0 0.0
        %430 = vmatprep.subr.mxu0 0.0
        %431 = vmatpush1.msra.mxu0 0.0
        %432 = vmatprep.subr.mxu0 0.0
        %433 = vmatpush1.msra.mxu0 0.0
        %434 = vmatprep.mubr.f32.mxu0 0.0
        %435 = vmatmul.mubr.f32.gmra.mrb[0].mxu0 %v285
        %v436 = vpop.f32.mrb[0].mxu0
        %v437 = vadd.f32 0.0, %v436
        %v438 = vpop.f32.mrb[0].mxu0
        %439 = vdwg.mxu0
        %v440 = vmul.f32 %v365, %v437
        %v441 = vld [vmem:[#allocation3] sm:$0xff]
        %v442 = vld [vmem:[%s259] sm:$0xff]
        %v443 = vld [vmem:[%s259 + $0x8] sm:$0xff]
        %v444 = vld [vmem:[%s259 + $0x10] sm:$0xff]
        %v445 = vld [vmem:[%s259 + $0x18] sm:$0xff]
        %v446 = vld [vmem:[%s259 + $0x20] sm:$0xff]
        %v447 = vld [vmem:[%s259 + $0x28] sm:$0xff]
        %v448 = vld [vmem:[%s259 + $0x30] sm:$0xff]
        %v449 = vld [vmem:[%s259 + $0x38] sm:$0xff]
        %v450 = vld [vmem:[%s259 + $0x40] sm:$0xff]
        %v451 = vld [vmem:[%s259 + $0x48] sm:$0xff]
        %v452 = vld [vmem:[%s259 + $0x50] sm:$0xff]
        %v453 = vld [vmem:[%s259 + $0x58] sm:$0xff]
        %v454 = vld [vmem:[%s259 + $0x60] sm:$0xff]
        %v455 = vld [vmem:[%s259 + $0x68] sm:$0xff]
        %v456 = vld [vmem:[%s259 + $0x70] sm:$0xff]
        %v457 = vld [vmem:[%s259 + $0x78] sm:$0xff]
        %458 = vmatprep.subr.mxu0 0.0
        %459 = vmatpush1.msra.mxu0 %v442
        %460 = vmatprep.subr.mxu0 0.0
        %461 = vmatpush1.msra.mxu0 %v443
        %462 = vmatprep.subr.mxu0 0.0
        %463 = vmatpush1.msra.mxu0 %v444
        %464 = vmatprep.subr.mxu0 0.0
        %465 = vmatpush1.msra.mxu0 %v445
        %466 = vmatprep.subr.mxu0 0.0
        %467 = vmatpush1.msra.mxu0 %v446
        %468 = vmatprep.subr.mxu0 0.0
        %469 = vmatpush1.msra.mxu0 %v447
        %470 = vmatprep.subr.mxu0 0.0
        %471 = vmatpush1.msra.mxu0 %v448
        %472 = vmatprep.subr.mxu0 0.0
        %473 = vmatpush1.msra.mxu0 %v449
        %474 = vmatprep.subr.mxu0 0.0
        %475 = vmatpush1.msra.mxu0 %v450
        %476 = vmatprep.subr.mxu0 0.0
        %477 = vmatpush1.msra.mxu0 %v451
        %478 = vmatprep.subr.mxu0 0.0
        %479 = vmatpush1.msra.mxu0 %v452
        %480 = vmatprep.subr.mxu0 0.0
        %481 = vmatpush1.msra.mxu0 %v453
        %482 = vmatprep.subr.mxu0 0.0
        %483 = vmatpush1.msra.mxu0 %v454
        %484 = vmatprep.subr.mxu0 0.0
        %485 = vmatpush1.msra.mxu0 %v455
        %486 = vmatprep.subr.mxu0 0.0
        %487 = vmatpush1.msra.mxu0 %v456
        %488 = vmatprep.subr.mxu0 0.0
        %489 = vmatpush1.msra.mxu0 %v457
        %490 = vmatprep.subr.mxu0 0.0
        %491 = vmatpush1.msra.mxu0 0.0
        %492 = vmatprep.subr.mxu0 0.0
        %493 = vmatpush1.msra.mxu0 0.0
        %494 = vmatprep.subr.mxu0 0.0
        %495 = vmatpush1.msra.mxu0 0.0
        %496 = vmatprep.subr.mxu0 0.0
        %497 = vmatpush1.msra.mxu0 0.0
        %498 = vmatprep.subr.mxu0 0.0
        %499 = vmatpush1.msra.mxu0 0.0
        %500 = vmatprep.subr.mxu0 0.0
        %501 = vmatpush1.msra.mxu0 0.0
        %502 = vmatprep.subr.mxu0 0.0
        %503 = vmatpush1.msra.mxu0 0.0
        %504 = vmatprep.subr.mxu0 0.0
        %505 = vmatpush1.msra.mxu0 0.0
        %506 = vmatprep.subr.mxu0 0.0
        %507 = vmatpush1.msra.mxu0 0.0
        %508 = vmatprep.subr.mxu0 0.0
        %509 = vmatpush1.msra.mxu0 0.0
        %510 = vmatprep.subr.mxu0 0.0
        %511 = vmatpush1.msra.mxu0 0.0
        %512 = vmatprep.subr.mxu0 0.0
        %513 = vmatpush1.msra.mxu0 0.0
        %514 = vmatprep.subr.mxu0 0.0
        %515 = vmatpush1.msra.mxu0 0.0
        %516 = vmatprep.subr.mxu0 0.0
        %517 = vmatpush1.msra.mxu0 0.0
        %518 = vmatprep.subr.mxu0 0.0
        %519 = vmatpush1.msra.mxu0 0.0
        %520 = vmatprep.subr.mxu0 0.0
        %521 = vmatpush1.msra.mxu0 0.0
        %522 = vmatprep.mubr.f32.mxu0 0.0
        %523 = vmatmul.mubr.f32.gmra.mrb[0].mxu0 %v440
        %v524 = vpop.f32.mrb[0].mxu0
        %v525 = vadd.f32 0.0, %v524
        %v526 = vpop.f32.mrb[0].mxu0
        %527 = vdwg.mxu0
        %v528 = vadd.f32 %v441, %v525
        %529 = vst.msk [vmem:[#allocation3] sm:$0xff] %vm283, %v528
        // Predicated region
        $region41: #{tpu_custom_call.1} parent=35 // pred_check
          %p530 = pneg %p261
        $region42: #{tpu_custom_call.1} parent=35 // pred_check_branch
          %532 = sbr.rel (%p530) target = $region44
        $region43: #{tpu_custom_call.1} parent=35 // pred_region
          %v533 = vld [vmem:[%s246] sm:$0xff]
          %v534 = vld [vmem:[#allocation3] sm:$0xff]
          %v535 = vadd.f32 %v533, %v534
          %536 = vst.msk [vmem:[%s242] sm:$0xff] %vm283, %v535
        $region44: #{tpu_custom_call.1} parent=35 // pred_fallthru
          _
        %s537 = sand.u32 %s142, 1
        %s538 = scalar_lea.sflag [#allocation5], %s537
        %s539 = sand.u32 %s142, 1
        %s540 = smul.addr %s539, 8
        %s541 = scalar_lea.vmem [#allocation4], %s540
        // Predicated region
        $region45: #{tpu_custom_call.1} parent=35 // pred_check
          %p542 = pneg %p152
        $region46: #{tpu_custom_call.1} parent=35 // pred_check_branch
          %544 = sbr.rel (%p542) target = $region48
        $region47: #{tpu_custom_call.1} parent=35 // pred_region
          %s546 = ssub.s32 128, 128
          %547 = vsyncadd %s538, %s546
          %s548 = smul.addr %s22, 128
          %s549 = scalar_lea.hbm %s4, %s548
          %s551 = sshll.u32 %s541, 4
          %s552 = int_to_ptr.vmem [resolvable:$true] %s551
          %554 = dma.vmem_to_hbm [thread:$0]  %s552, 128, %s549, %s538
        $region48: #{tpu_custom_call.1} parent=35 // pred_fallthru
          _
      $region36: #{tpu_custom_call.1} parent=5 // pred_fallthru
        _
      %p555 = scmp.le.s32.totalorder 2, %s13
      // Predicated region
      $region49: #{tpu_custom_call.1} parent=5 // pred_check
        %p556 = pneg %p555
      $region50: #{tpu_custom_call.1} parent=5 // pred_check_branch
        %558 = sbr.rel (%p556) target = $region52
      $region51: #{tpu_custom_call.1} parent=5 // pred_region
        %s559 = ssub.s32 %s13, 2
        // Predicated region
        $region53: #{tpu_custom_call.1} parent=51 // pred_check
          %p560 = pneg %p158
        $region54: #{tpu_custom_call.1} parent=51 // pred_check_branch
          %562 = sbr.rel (%p560) target = $region56
        $region55: #{tpu_custom_call.1} parent=51 // pred_region
          %s563 = sand.u32 %s143, 1
          %s564 = scalar_lea.sflag [#allocation5], %s563
          %s565 = sand.u32 %s143, 1
          %s566 = smul.addr %s565, 8
          %s567 = scalar_lea.vmem [#allocation4], %s566
          %568 = dma.done %s564, 128
        $region56: #{tpu_custom_call.1} parent=51 // pred_fallthru
          _
      $region52: #{tpu_custom_call.1} parent=5 // pred_fallthru
        _
    $region6: #{tpu_custom_call.1} parent=1 // loop_footer
      %s17 = sadd.s32 1, %s13
    $region7: #{tpu_custom_call.1} parent=1 // loop_footer_branch
      %12 = sbr.rel target = $region3
    $region8: #{tpu_custom_call.1} parent=1 // loop_exit
      _
    %569 = vsyncpa [#allocation5], 1
    %s570 = scalar_lea.sflag [#allocation5], 1
    %571 = vsyncpa %s570, 1

</llo_original>
